<compile_context>
chip_gen: v7x
topology: tpu7x:2x2x1
jax: 0.10.0
libtpu: 0.0.40
codegen_flags: <defaults>
</compile_context>

<pallas_src>
import jax
import jax.numpy as jnp
from jax import lax
from jax.experimental import pallas as pl
from jax.experimental.pallas import tpu as pltpu


# Hidden sizes fixed by the PyTorch module: 64 -> 32 -> 16 -> 1.
_H1, _H2, _H3 = 64, 32, 16
# Offsets inside the packed [b1|b2|b3|w4|b4] column.
_O1, _O2, _O3, _O4, _O5 = 0, _H1, _H1 + _H2, _H1 + _H2 + _H3, _H1 + _H2 + 2 * _H3
_PACKED_LEN = _O5 + 1                               # 129

# Contract the LAST dim of both operands: (M,K) x (N,K) -> (M,N)  ("NT" matmul).
_NT_DIMS = (((1,), (1,)), ((), ()))


def critic_kernel(x_ref, w1_ref, w2_ref, w3_ref, pk_ref, out_ref):
    """One batch tile of the Critic MLP, feature-major activations.

    x_ref  : (T, S)  f32 state tile (batch-major in HBM)
    w1_ref : (64, S) f32    w2_ref : (32, 64) bf16    w3_ref : (16, 32) bf16
             (PyTorch (out,in) orientation; VMEM-resident across all tiles)
    pk_ref : (129, 1) f32 packed [b1|b2|b3|w4|b4] column, VMEM-resident
    out_ref: (1, T)  f32 lane-dense value row for this tile
    """
    b1 = pk_ref[_O1:_O2, :]              # (64, 1)
    b2 = pk_ref[_O2:_O3, :]              # (32, 1)
    b3 = pk_ref[_O3:_O4, :]              # (16, 1)
    w4 = pk_ref[_O4:_O5, :]              # (16, 1)
    b4 = pk_ref[_O5:_O5 + 1, :]          # (1, 1)

    # Layer 1: (64,S) x (T,S)^T -> (64,T).  NT dot_general keeps the narrow
    # (T, S=8) state tile on the 32-bit path and avoids an explicit transpose
    # op; with K=8 the f32 MXU cost is negligible.
    z1 = lax.dot_general(w1_ref[...], x_ref[...], _NT_DIMS,
                         preferred_element_type=jnp.float32)
    h1 = jnp.maximum(z1 + b1, 0.0).astype(jnp.bfloat16)         # (64, T)

    # Layers 2/3: bf16 operands, f32 accumulation (MXU-native on all gens).
    z2 = jnp.dot(w2_ref[...], h1, preferred_element_type=jnp.float32)
    h2 = jnp.maximum(z2 + b2, 0.0).astype(jnp.bfloat16)         # (32, T)

    z3 = jnp.dot(w3_ref[...], h2, preferred_element_type=jnp.float32)
    h3 = jnp.maximum(z3 + b3, 0.0)                              # (16, T) f32

    # Value head 16 -> 1: VPU broadcast-mul + sublane reduce.  The result is
    # already the lane-dense (1, T) row this tile stores -- no relayout.
    v = jnp.sum(h3 * w4, axis=0, keepdims=True) + b4
    out_ref[...] = v.astype(out_ref.dtype)


def _round_up(x, m):
    return ((x + m - 1) // m) * m


def critic_forward(state, params, *, tile_b=4096):
    """Pallas forward pass of the A2C Critic.  state: (B, state_dim) f32 -> (B, 1)."""
    (w1, b1), (w2, b2), (w3, b3), (w4, b4) = params
    B, S = state.shape

    # --- batch-tile selection ------------------------------------------------
    # Big tiles amortize the per-grid-step pipeline overhead; keep the output
    # lane axis a multiple of 128 and cap at ceil(B/2) so there are >= 2 grid
    # steps whenever possible (v7x megacore balance; harmless on v5e/v6e).
    tile_b = max(128, min(int(tile_b), _round_up(pl.cdiv(B, 2), 128)))

    state_in = state
    if B < tile_b:
        # Tiny batch: one 8-aligned tile; padding a handful of rows costs a few
        # KB.  Large batches are NOT padded -- the partial last block's tail
        # rows hold undefined data, never mix across batch columns, and are
        # sliced off below.
        tile_b = max(8, _round_up(B, 8))
        if tile_b != B:
            state_in = jnp.pad(state, ((0, tile_b - B), (0, 0)))
    num_tiles = pl.cdiv(B, tile_b)

    # bf16 weights for the layer-2/3 MXU matmuls (f32 accumulation in-kernel).
    w2b = w2.astype(jnp.bfloat16)
    w3b = w3.astype(jnp.bfloat16)

    # Pack the small per-feature vectors into ONE resident f32 column.
    packed = jnp.concatenate([b1, b2, b3, w4.reshape(-1), b4]).reshape(_PACKED_LEN, 1)

    def resident(a):
        # Whole array, constant block index -> DMA'd once, stays VMEM-resident.
        return pl.BlockSpec(a.shape, lambda i: (0, 0))

    out = pl.pallas_call(
        critic_kernel,
        out_shape=jax.ShapeDtypeStruct((num_tiles, tile_b), jnp.float32),
        grid=(num_tiles,),
        in_specs=[
            pl.BlockSpec((tile_b, S), lambda i: (i, 0)),       # state: row tiles
            resident(w1), resident(w2b), resident(w3b), resident(packed),
        ],
        out_specs=pl.BlockSpec((1, tile_b), lambda i: (i, 0)),
        compiler_params=pltpu.CompilerParams(
            # Independent batch tiles -> shard across both v7x TensorCores.
            dimension_semantics=("parallel",),
            # Guard rail for tile sweeps (footprint ~8 MiB at tile_b=4096).
            vmem_limit_bytes=32 * 1024 * 1024),
    )(state_in, w1, w2b, w3b, packed)

    return out.reshape(-1)[:B].reshape(B, 1)


def init_params(key, state_dim):
    """PyTorch nn.Linear-style init; weights kept in (out_features, in_features)."""
    dims = [(state_dim, _H1), (_H1, _H2), (_H2, _H3), (_H3, 1)]
    params = []
    for i, (fan_in, fan_out) in enumerate(dims):
        kw, kb = jax.random.split(jax.random.fold_in(key, i))
        bound = 1.0 / (fan_in ** 0.5)
        w = jax.random.uniform(kw, (fan_out, fan_in), jnp.float32, -bound, bound)
        b = jax.random.uniform(kb, (fan_out,), jnp.float32, -bound, bound)
        params.append((w, b))
    return params


def critic_reference(state, params, *, match_kernel_dtypes=False):
    """Pure-JAX reference.  match_kernel_dtypes mirrors the kernel's bf16
    layer-2/3 matmuls (layer 1 and all elementwise math stay f32)."""
    (w1, b1), (w2, b2), (w3, b3), (w4, b4) = params
    hi = lax.Precision.HIGHEST
    h1 = jnp.maximum(jnp.dot(state, w1.T, precision=hi) + b1, 0.0)
    if match_kernel_dtypes:
        z2 = jnp.dot(h1.astype(jnp.bfloat16), w2.T.astype(jnp.bfloat16),
                     preferred_element_type=jnp.float32)
    else:
        z2 = jnp.dot(h1, w2.T, precision=hi)
    h2 = jnp.maximum(z2 + b2, 0.0)
    if match_kernel_dtypes:
        z3 = jnp.dot(h2.astype(jnp.bfloat16), w3.T.astype(jnp.bfloat16),
                     preferred_element_type=jnp.float32)
    else:
        z3 = jnp.dot(h2, w3.T, precision=hi)
    h3 = jnp.maximum(z3 + b3, 0.0)
    return jnp.dot(h3, w4.T, precision=hi) + b4


if __name__ == "__main__":
    key = jax.random.PRNGKey(0)
    state_dim = 8
    k_state, k_params, k_big = jax.random.split(key, 3)
    params = init_params(k_params, state_dim)

    # Small batch (typical A2C rollout step): exercises the tiny-tile path.
    state = jax.random.normal(k_state, (4, state_dim), dtype=jnp.float32)
    v = jax.block_until_ready(critic_forward(state, params))
    assert v.shape == (4, 1)
    assert jnp.allclose(v, critic_reference(state, params, match_kernel_dtypes=True),
                        atol=5e-3, rtol=5e-3)
    assert jnp.allclose(v, critic_reference(state, params), atol=3e-2, rtol=3e-2)

    # Larger batch: multiple tiles + a partial (un-padded) last block.
    big_state = jax.random.normal(k_big, (700, state_dim), dtype=jnp.float32)
    v_big = jax.block_until_ready(critic_forward(big_state, params))
    assert v_big.shape == (700, 1)
    assert jnp.allclose(v_big, critic_reference(big_state, params, match_kernel_dtypes=True),
                        atol=5e-3, rtol=5e-3)
    assert jnp.allclose(v_big, critic_reference(big_state, params), atol=3e-2, rtol=3e-2)

    print("KERNEL_OK")
</pallas_src>

<mosaic_0001>
module attributes {stable_mosaic.version = 11 : i64} {
  func.func @critic_kernel(%arg0: i32, %arg1: memref<8x8xf32, #tpu.memory_space<vmem>>, %arg2: memref<64x8xf32, #tpu.memory_space<vmem>>, %arg3: memref<32x64xbf16, #tpu.memory_space<vmem>>, %arg4: memref<16x32xbf16, #tpu.memory_space<vmem>>, %arg5: memref<129x1xf32, #tpu.memory_space<vmem>>, %arg6: memref<1x8xf32, #tpu.memory_space<vmem>>) attributes {dimension_semantics = [#tpu.dimension_semantics<parallel>], iteration_bounds = array<i64: 1>, scalar_prefetch = 0 : i64, scratch_operands = 0 : i64, tpu.core_type = #tpu.core_type<tc>, window_params = [{transform_indices = @transform_0, window_bounds = array<i64: 8, 8>}, {pipeline_mode = #tpu.pipeline_mode<synchronous>, transform_indices = @transform_1, window_bounds = array<i64: 64, 8>}, {pipeline_mode = #tpu.pipeline_mode<synchronous>, transform_indices = @transform_2, window_bounds = array<i64: 32, 64>}, {pipeline_mode = #tpu.pipeline_mode<synchronous>, transform_indices = @transform_3, window_bounds = array<i64: 16, 32>}, {pipeline_mode = #tpu.pipeline_mode<synchronous>, transform_indices = @transform_4, window_bounds = array<i64: 129, 1>}, {transform_indices = @transform_5, window_bounds = array<i64: 1, 8>}]} {
    %c0 = arith.constant 0 : index
    %c0_0 = arith.constant 0 : index
    %0 = vector.load %arg5[%c0, %c0_0] : memref<129x1xf32, #tpu.memory_space<vmem>>, vector<64x1xf32>
    %c64 = arith.constant 64 : index
    %c0_1 = arith.constant 0 : index
    %1 = vector.load %arg5[%c64, %c0_1] : memref<129x1xf32, #tpu.memory_space<vmem>>, vector<32x1xf32>
    %c96 = arith.constant 96 : index
    %c0_2 = arith.constant 0 : index
    %2 = vector.load %arg5[%c96, %c0_2] : memref<129x1xf32, #tpu.memory_space<vmem>>, vector<16x1xf32>
    %c112 = arith.constant 112 : index
    %c0_3 = arith.constant 0 : index
    %3 = vector.load %arg5[%c112, %c0_3] : memref<129x1xf32, #tpu.memory_space<vmem>>, vector<16x1xf32>
    %c128 = arith.constant 128 : index
    %c0_4 = arith.constant 0 : index
    %4 = vector.load %arg5[%c128, %c0_4] : memref<129x1xf32, #tpu.memory_space<vmem>>, vector<1x1xf32>
    %c0_5 = arith.constant 0 : index
    %c0_6 = arith.constant 0 : index
    %5 = vector.load %arg2[%c0_5, %c0_6] : memref<64x8xf32, #tpu.memory_space<vmem>>, vector<64x8xf32>
    %c0_7 = arith.constant 0 : index
    %c0_8 = arith.constant 0 : index
    %6 = vector.load %arg1[%c0_7, %c0_8] : memref<8x8xf32, #tpu.memory_space<vmem>>, vector<8x8xf32>
    %cst = arith.constant dense<0.000000e+00> : vector<64x8xf32>
    %7 = tpu.matmul %5, %6, %cst {dimension_numbers = #tpu.dot_dimension_numbers<[1], [1], [0], [0], [0, 0, 1, 0], [], []>} : vector<64x8xf32>, vector<8x8xf32>, vector<64x8xf32> -> vector<64x8xf32>
    %8 = vector.broadcast %0 : vector<64x1xf32> to vector<64x8xf32>
    %9 = arith.addf %7, %8 : vector<64x8xf32>
    %cst_9 = arith.constant 0.000000e+00 : f32
    %10 = vector.broadcast %cst_9 : f32 to vector<64x8xf32>
    %11 = arith.maximumf %9, %10 : vector<64x8xf32>
    %12 = arith.truncf %11 : vector<64x8xf32> to vector<64x8xbf16>
    %c0_10 = arith.constant 0 : index
    %c0_11 = arith.constant 0 : index
    %13 = vector.load %arg3[%c0_10, %c0_11] : memref<32x64xbf16, #tpu.memory_space<vmem>>, vector<32x64xbf16>
    %cst_12 = arith.constant dense<0.000000e+00> : vector<32x8xf32>
    %14 = tpu.matmul %13, %12, %cst_12 {dimension_numbers = #tpu.dot_dimension_numbers<[1], [0], [0], [1], [0, 0, 1, 1], [], []>} : vector<32x64xbf16>, vector<64x8xbf16>, vector<32x8xf32> -> vector<32x8xf32>
    %15 = vector.broadcast %1 : vector<32x1xf32> to vector<32x8xf32>
    %16 = arith.addf %14, %15 : vector<32x8xf32>
    %cst_13 = arith.constant 0.000000e+00 : f32
    %17 = vector.broadcast %cst_13 : f32 to vector<32x8xf32>
    %18 = arith.maximumf %16, %17 : vector<32x8xf32>
    %19 = arith.truncf %18 : vector<32x8xf32> to vector<32x8xbf16>
    %c0_14 = arith.constant 0 : index
    %c0_15 = arith.constant 0 : index
    %20 = vector.load %arg4[%c0_14, %c0_15] : memref<16x32xbf16, #tpu.memory_space<vmem>>, vector<16x32xbf16>
    %cst_16 = arith.constant dense<0.000000e+00> : vector<16x8xf32>
    %21 = tpu.matmul %20, %19, %cst_16 {dimension_numbers = #tpu.dot_dimension_numbers<[1], [0], [0], [1], [0, 0, 1, 1], [], []>} : vector<16x32xbf16>, vector<32x8xbf16>, vector<16x8xf32> -> vector<16x8xf32>
    %22 = vector.broadcast %2 : vector<16x1xf32> to vector<16x8xf32>
    %23 = arith.addf %21, %22 : vector<16x8xf32>
    %cst_17 = arith.constant 0.000000e+00 : f32
    %24 = vector.broadcast %cst_17 : f32 to vector<16x8xf32>
    %25 = arith.maximumf %23, %24 : vector<16x8xf32>
    %26 = vector.broadcast %3 : vector<16x1xf32> to vector<16x8xf32>
    %27 = arith.mulf %25, %26 : vector<16x8xf32>
    %cst_18 = arith.constant dense<0.000000e+00> : vector<8xf32>
    %28 = vector.multi_reduction <add>, %27, %cst_18 [0] : vector<16x8xf32> to vector<8xf32>
    %29 = vector.shape_cast %28 : vector<8xf32> to vector<1x8xf32>
    %30 = vector.broadcast %4 : vector<1x1xf32> to vector<1x8xf32>
    %31 = arith.addf %29, %30 : vector<1x8xf32>
    %c0_19 = arith.constant 0 : index
    %c0_20 = arith.constant 0 : index
    %32 = vector.load %arg6[%c0_19, %c0_20] : memref<1x8xf32, #tpu.memory_space<vmem>>, vector<1x8xf32>
    tpu.vector_store %arg6[%c0_19, %c0_20], %31 {strides = array<i32>} : memref<1x8xf32, #tpu.memory_space<vmem>>, vector<1x8xf32>,
    return
  }
  func.func @transform_0(%arg0: i32) -> (i32, i32) {
    %c0_i32 = arith.constant 0 : i32
    %c0_i32_0 = arith.constant 0 : i32
    return %arg0, %c0_i32 : i32, i32
  }
  func.func @transform_1(%arg0: i32) -> (i32, i32) {
    %c0_i32 = arith.constant 0 : i32
    %c0_i32_0 = arith.constant 0 : i32
    %c0_i32_1 = arith.constant 0 : i32
    return %c0_i32, %c0_i32_0 : i32, i32
  }
  func.func @transform_2(%arg0: i32) -> (i32, i32) {
    %c0_i32 = arith.constant 0 : i32
    %c0_i32_0 = arith.constant 0 : i32
    %c0_i32_1 = arith.constant 0 : i32
    return %c0_i32, %c0_i32_0 : i32, i32
  }
  func.func @transform_3(%arg0: i32) -> (i32, i32) {
    %c0_i32 = arith.constant 0 : i32
    %c0_i32_0 = arith.constant 0 : i32
    %c0_i32_1 = arith.constant 0 : i32
    return %c0_i32, %c0_i32_0 : i32, i32
  }
  func.func @transform_4(%arg0: i32) -> (i32, i32) {
    %c0_i32 = arith.constant 0 : i32
    %c0_i32_0 = arith.constant 0 : i32
    %c0_i32_1 = arith.constant 0 : i32
    return %c0_i32, %c0_i32_0 : i32, i32
  }
  func.func @transform_5(%arg0: i32) -> (i32, i32) {
    %c0_i32 = arith.constant 0 : i32
    %c0_i32_0 = arith.constant 0 : i32
    return %arg0, %c0_i32 : i32, i32
  }
}

</mosaic_0001>

<llo_original>
// kernel: tpu_custom_call.1
$region0: #{tpu_custom_call.1}
  #allocation0 [shape = 'u32[]', space=smem, size = 0x4, offset = 0x4, fixed_abs, tag = 'smem constant byte address 0x4 - core index']
  #allocation1 [shape = 'u32[144,128]{1,0:T(1,128)}', space=vmem, size = 0x12000, scoped, tag = 'internal scratch']
  %s0 = inlined_call_operand.vmem [shape: f32[8,8], index: 0, kind: input, shape index: {}]
  %s1 = inlined_call_operand.vmem [shape: f32[64,8], index: 1, kind: input, shape index: {}]
  %s2 = inlined_call_operand.vmem [shape: bf16[32,64], index: 2, kind: input, shape index: {}]
  %s3 = inlined_call_operand.vmem [shape: bf16[16,32], index: 3, kind: input, shape index: {}]
  %s4 = inlined_call_operand.vmem [shape: f32[129,1], index: 4, kind: input, shape index: {}]
  %s5 = inlined_call_operand.hbm [shape: f32[1,8], index: 5, kind: output, shape index: {}]
  %s6 = sld [smem:[#allocation0]]
  $region30: #{tpu_custom_call.1} parent=0
    _
  %s8 = ssub.s32 1, %s6
  %s9 = scalar_select 0, %s8, %s6
  $region1: #{tpu_custom_call.1} parent=0
    #allocation2 [shape = 'u8[512]{0}', space=vmem, size = 0x400, scoped, tag = 'output window, operand 0, single buffered']
    #allocation3 [shape = 's32[1]{0}', space=sflag, size = 0x4, scoped, tag = 'scoped memory for tpu_custom_call.1']
    %10 = vsyncpa [#allocation3], 0
    // Predicated region
    $region2: #{tpu_custom_call.1} parent=1 // pred_check
      _
    $region3: #{tpu_custom_call.1} parent=1 // pred_check_branch
      %12 = sbr.rel (0) target = $region5
    $region4: #{tpu_custom_call.1} parent=1 // pred_region
      _
    $region5: #{tpu_custom_call.1} parent=1 // pred_fallthru
      _
    // Predicated region
    $region6: #{tpu_custom_call.1} parent=1 // pred_check
      _
    $region7: #{tpu_custom_call.1} parent=1 // pred_check_branch
      %14 = sbr.rel (0) target = $region9
    $region8: #{tpu_custom_call.1} parent=1 // pred_region
      _
    $region9: #{tpu_custom_call.1} parent=1 // pred_fallthru
      _
    // Predicated region
    $region10: #{tpu_custom_call.1} parent=1 // pred_check
      _
    $region11: #{tpu_custom_call.1} parent=1 // pred_check_branch
      %16 = sbr.rel (0) target = $region13
    $region12: #{tpu_custom_call.1} parent=1 // pred_region
      _
    $region13: #{tpu_custom_call.1} parent=1 // pred_fallthru
      _
    // Predicated region
    $region14: #{tpu_custom_call.1} parent=1 // pred_check
      _
    $region15: #{tpu_custom_call.1} parent=1 // pred_check_branch
      %18 = sbr.rel (0) target = $region17
    $region16: #{tpu_custom_call.1} parent=1 // pred_region
      _
    $region17: #{tpu_custom_call.1} parent=1 // pred_fallthru
      _
    // Predicated region
    $region18: #{tpu_custom_call.1} parent=1 // pred_check
      _
    $region19: #{tpu_custom_call.1} parent=1 // pred_check_branch
      %20 = sbr.rel (0) target = $region21
    $region20: #{tpu_custom_call.1} parent=1 // pred_region
      _
    $region21: #{tpu_custom_call.1} parent=1 // pred_fallthru
      _
    %v22 = vld [vmem:[%s4] sm:$0xff]
    %v23 = vld [vmem:[%s4 + $0x8] sm:$0xff]
    %v24 = vld [vmem:[%s4 + $0x10] sm:$0xff]
    %v25 = vld [vmem:[%s4 + $0x18] sm:$0xff]
    %v26 = vld [vmem:[%s4 + $0x20] sm:$0xff]
    %v27 = vld [vmem:[%s4 + $0x28] sm:$0xff]
    %v28 = vld [vmem:[%s4 + $0x30] sm:$0xff]
    %v29 = vld [vmem:[%s4 + $0x38] sm:$0xff]
    %v30 = vld [vmem:[%s4 + $0x40] sm:$0xff]
    %v31 = vld [vmem:[%s4 + $0x48] sm:$0xff]
    %v32 = vld [vmem:[%s4 + $0x50] sm:$0xff]
    %v33 = vld [vmem:[%s4 + $0x58] sm:$0xff]
    %v34 = vld [vmem:[%s4 + $0x60] sm:$0xff]
    %v35 = vld [vmem:[%s4 + $0x68] sm:$0xff]
    %v36 = vld [vmem:[%s4 + $0x70] sm:$0xff]
    %v37 = vld [vmem:[%s4 + $0x78] sm:$0xff]
    %v38 = vld [vmem:[%s4 + $0x80] sm:$0x1]
    %v39 = vld [vmem:[%s1] sm:$0xff]
    %v40 = vld [vmem:[%s1 + $0x8] sm:$0xff]
    %v41 = vld [vmem:[%s1 + $0x10] sm:$0xff]
    %v42 = vld [vmem:[%s1 + $0x18] sm:$0xff]
    %v43 = vld [vmem:[%s1 + $0x20] sm:$0xff]
    %v44 = vld [vmem:[%s1 + $0x28] sm:$0xff]
    %v45 = vld [vmem:[%s1 + $0x30] sm:$0xff]
    %v46 = vld [vmem:[%s1 + $0x38] sm:$0xff]
    %v47 = vld [vmem:[%s0] sm:$0xff]
    %49 = vset.pattern.permute.xlu0 0
    %50 = vperm.xlu0 %49, %v22
    %v51 = vpop.permute.xlu0 %50
    %54 = vset.pattern.permute.xlu0 0
    %55 = vperm.xlu0 %54, %v23
    %v56 = vpop.permute.xlu0 %55
    %59 = vset.pattern.permute.xlu0 0
    %60 = vperm.xlu0 %59, %v24
    %v61 = vpop.permute.xlu0 %60
    %64 = vset.pattern.permute.xlu0 0
    %65 = vperm.xlu0 %64, %v25
    %v66 = vpop.permute.xlu0 %65
    %69 = vset.pattern.permute.xlu0 0
    %70 = vperm.xlu0 %69, %v26
    %v71 = vpop.permute.xlu0 %70
    %74 = vset.pattern.permute.xlu0 0
    %75 = vperm.xlu0 %74, %v27
    %v76 = vpop.permute.xlu0 %75
    %79 = vset.pattern.permute.xlu0 0
    %80 = vperm.xlu0 %79, %v28
    %v81 = vpop.permute.xlu0 %80
    %84 = vset.pattern.permute.xlu0 0
    %85 = vperm.xlu0 %84, %v29
    %v86 = vpop.permute.xlu0 %85
    %vm88 = vcmask 64512
    %v90 = vsel %vm88, %v39, 0
    %v93 = vsel %vm88, %v40, 0
    %v96 = vsel %vm88, %v41, 0
    %v99 = vsel %vm88, %v42, 0
    %v102 = vsel %vm88, %v43, 0
    %v105 = vsel %vm88, %v44, 0
    %v108 = vsel %vm88, %v45, 0
    %v111 = vsel %vm88, %v46, 0
    %v114 = vsel %vm88, %v47, 0
    %116 = vmatprep.subr.mxu0 0.0
    %117 = vmatpush1.xpose.msra.mxu0 %v114
    %118 = vmatprep.subr.mxu0 0.0
    %119 = vmatpush1.xpose.msra.mxu0 0.0
    %120 = vmatprep.subr.mxu0 0.0
    %121 = vmatpush1.xpose.msra.mxu0 0.0
    %122 = vmatprep.subr.mxu0 0.0
    %123 = vmatpush1.xpose.msra.mxu0 0.0
    %124 = vmatprep.subr.mxu0 0.0
    %125 = vmatpush1.xpose.msra.mxu0 0.0
    %126 = vmatprep.subr.mxu0 0.0
    %127 = vmatpush1.xpose.msra.mxu0 0.0
    %128 = vmatprep.subr.mxu0 0.0
    %129 = vmatpush1.xpose.msra.mxu0 0.0
    %130 = vmatprep.subr.mxu0 0.0
    %131 = vmatpush1.xpose.msra.mxu0 0.0
    %132 = vmatprep.subr.mxu0 0.0
    %133 = vmatpush1.xpose.msra.mxu0 0.0
    %134 = vmatprep.subr.mxu0 0.0
    %135 = vmatpush1.xpose.msra.mxu0 0.0
    %136 = vmatprep.subr.mxu0 0.0
    %137 = vmatpush1.xpose.msra.mxu0 0.0
    %138 = vmatprep.subr.mxu0 0.0
    %139 = vmatpush1.xpose.msra.mxu0 0.0
    %140 = vmatprep.subr.mxu0 0.0
    %141 = vmatpush1.xpose.msra.mxu0 0.0
    %142 = vmatprep.subr.mxu0 0.0
    %143 = vmatpush1.xpose.msra.mxu0 0.0
    %144 = vmatprep.subr.mxu0 0.0
    %145 = vmatpush1.xpose.msra.mxu0 0.0
    %146 = vmatprep.subr.mxu0 0.0
    %147 = vmatpush1.xpose.msra.mxu0 0.0
    %148 = vmatprep.subr.mxu0 0.0
    %149 = vmatpush1.xpose.msra.mxu0 0.0
    %150 = vmatprep.subr.mxu0 0.0
    %151 = vmatpush1.xpose.msra.mxu0 0.0
    %152 = vmatprep.subr.mxu0 0.0
    %153 = vmatpush1.xpose.msra.mxu0 0.0
    %154 = vmatprep.subr.mxu0 0.0
    %155 = vmatpush1.xpose.msra.mxu0 0.0
    %156 = vmatprep.subr.mxu0 0.0
    %157 = vmatpush1.xpose.msra.mxu0 0.0
    %158 = vmatprep.subr.mxu0 0.0
    %159 = vmatpush1.xpose.msra.mxu0 0.0
    %160 = vmatprep.subr.mxu0 0.0
    %161 = vmatpush1.xpose.msra.mxu0 0.0
    %162 = vmatprep.subr.mxu0 0.0
    %163 = vmatpush1.xpose.msra.mxu0 0.0
    %164 = vmatprep.subr.mxu0 0.0
    %165 = vmatpush1.xpose.msra.mxu0 0.0
    %166 = vmatprep.subr.mxu0 0.0
    %167 = vmatpush1.xpose.msra.mxu0 0.0
    %168 = vmatprep.subr.mxu0 0.0
    %169 = vmatpush1.xpose.msra.mxu0 0.0
    %170 = vmatprep.subr.mxu0 0.0
    %171 = vmatpush1.xpose.msra.mxu0 0.0
    %172 = vmatprep.subr.mxu0 0.0
    %173 = vmatpush1.xpose.msra.mxu0 0.0
    %174 = vmatprep.subr.mxu0 0.0
    %175 = vmatpush1.xpose.msra.mxu0 0.0
    %176 = vmatprep.subr.mxu0 0.0
    %177 = vmatpush1.xpose.msra.mxu0 0.0
    %178 = vmatprep.subr.mxu0 0.0
    %179 = vmatpush1.xpose.msra.mxu0 0.0
    %180 = vmatprep.mubr.f32.mxu0 0.0
    %181 = vmatmul.mubr.f32.gmra.mrb[0].mxu0 %v90
    %v182 = vpop.f32.mrb[0].mxu0
    %v183 = vadd.f32 %v51, %v182
    %v184 = vpop.f32.mrb[0].mxu0
    %185 = vmatprep.mubr.f32.mxu0 0.0
    %186 = vmatmul.mubr.f32.gmra.mrb[0].mxu0 %v93
    %v187 = vpop.f32.mrb[0].mxu0
    %v188 = vadd.f32 %v56, %v187
    %v189 = vpop.f32.mrb[0].mxu0
    %190 = vmatprep.mubr.f32.mxu0 0.0
    %191 = vmatmul.mubr.f32.gmra.mrb[0].mxu0 %v96
    %v192 = vpop.f32.mrb[0].mxu0
    %v193 = vadd.f32 %v61, %v192
    %v194 = vpop.f32.mrb[0].mxu0
    %195 = vmatprep.mubr.f32.mxu0 0.0
    %196 = vmatmul.mubr.f32.gmra.mrb[0].mxu0 %v99
    %v197 = vpop.f32.mrb[0].mxu0
    %v198 = vadd.f32 %v66, %v197
    %v199 = vpop.f32.mrb[0].mxu0
    %200 = vmatprep.mubr.f32.mxu0 0.0
    %201 = vmatmul.mubr.f32.gmra.mrb[0].mxu0 %v102
    %v202 = vpop.f32.mrb[0].mxu0
    %v203 = vadd.f32 %v71, %v202
    %v204 = vpop.f32.mrb[0].mxu0
    %205 = vmatprep.mubr.f32.mxu0 0.0
    %206 = vmatmul.mubr.f32.gmra.mrb[0].mxu0 %v105
    %v207 = vpop.f32.mrb[0].mxu0
    %v208 = vadd.f32 %v76, %v207
    %v209 = vpop.f32.mrb[0].mxu0
    %210 = vmatprep.mubr.f32.mxu0 0.0
    %211 = vmatmul.mubr.f32.gmra.mrb[0].mxu0 %v108
    %v212 = vpop.f32.mrb[0].mxu0
    %v213 = vadd.f32 %v81, %v212
    %v214 = vpop.f32.mrb[0].mxu0
    %215 = vmatprep.mubr.f32.mxu0 0.0
    %216 = vmatmul.mubr.f32.gmra.mrb[0].mxu0 %v111
    %v217 = vpop.f32.mrb[0].mxu0
    %v218 = vadd.f32 %v86, %v217
    %v219 = vpop.f32.mrb[0].mxu0
    %220 = vdwg.mxu0
    %v221 = vmax.f32 %v183, 0.0
    %v222 = vmax.f32 %v188, 0.0
    %v223 = vmax.f32 %v193, 0.0
    %v224 = vmax.f32 %v198, 0.0
    %v225 = vmax.f32 %v203, 0.0
    %v226 = vmax.f32 %v208, 0.0
    %v227 = vmax.f32 %v213, 0.0
    %v228 = vmax.f32 %v218, 0.0
    %v229 = vpack.c.bf16 %v222, %v221
    %v230 = vpack.c.bf16 %v224, %v223
    %v231 = vpack.c.bf16 %v226, %v225
    %v232 = vpack.c.bf16 %v228, %v227
    %v233 = vld [vmem:[%s2] sm:$0xf]
    %v234 = vld [vmem:[%s2 + $0x4] sm:$0xf]
    %v235 = vld [vmem:[%s2 + $0x8] sm:$0xf]
    %v236 = vld [vmem:[%s2 + $0xc] sm:$0xf]
    %238 = vset.pattern.permute.xlu0 0
    %239 = vperm.xlu0 %238, %v30
    %v240 = vpop.permute.xlu0 %239
    %243 = vset.pattern.permute.xlu0 0
    %244 = vperm.xlu0 %243, %v31
    %v245 = vpop.permute.xlu0 %244
    %248 = vset.pattern.permute.xlu0 0
    %249 = vperm.xlu0 %248, %v32
    %v250 = vpop.permute.xlu0 %249
    %253 = vset.pattern.permute.xlu0 0
    %254 = vperm.xlu0 %253, %v33
    %v255 = vpop.permute.xlu0 %254
    %v261 = vunpack.c.l.b16 %v233
    %v262 = vunpack.c.l.b16 %v234
    %v263 = vunpack.c.l.b16 %v235
    %v264 = vunpack.c.l.b16 %v236
    %v265 = vpack.c.b16 %v262, %v261
    %v266 = vpack.c.b16 %v264, %v263
    %vm267 = vcmask 523264
    %v269 = vsel %vm267, %v265, 0
    %v272 = vsel %vm267, %v266, 0
    %274 = vmatprep.subr.bf16.mxu0 0
    %275 = vmatpush1.bf16.msra.mxu0 %v229
    %276 = vmatprep.subr.bf16.mxu0 0
    %277 = vmatpush1.bf16.msra.mxu0 %v230
    %278 = vmatprep.subr.bf16.mxu0 0
    %279 = vmatpush1.bf16.msra.mxu0 %v231
    %280 = vmatprep.subr.bf16.mxu0 0
    %281 = vmatpush1.bf16.msra.mxu0 %v232
    %282 = vmatprep.subr.bf16.mxu0 0
    %283 = vmatpush1.bf16.msra.mxu0 0
    %284 = vmatprep.subr.bf16.mxu0 0
    %285 = vmatpush1.bf16.msra.mxu0 0
    %286 = vmatprep.subr.bf16.mxu0 0
    %287 = vmatpush1.bf16.msra.mxu0 0
    %288 = vmatprep.subr.bf16.mxu0 0
    %289 = vmatpush1.bf16.msra.mxu0 0
    %290 = vmatprep.subr.bf16.mxu0 0
    %291 = vmatpush1.bf16.msra.mxu0 0
    %292 = vmatprep.subr.bf16.mxu0 0
    %293 = vmatpush1.bf16.msra.mxu0 0
    %294 = vmatprep.subr.bf16.mxu0 0
    %295 = vmatpush1.bf16.msra.mxu0 0
    %296 = vmatprep.subr.bf16.mxu0 0
    %297 = vmatpush1.bf16.msra.mxu0 0
    %298 = vmatprep.subr.bf16.mxu0 0
    %299 = vmatpush1.bf16.msra.mxu0 0
    %300 = vmatprep.subr.bf16.mxu0 0
    %301 = vmatpush1.bf16.msra.mxu0 0
    %302 = vmatprep.subr.bf16.mxu0 0
    %303 = vmatpush1.bf16.msra.mxu0 0
    %304 = vmatprep.subr.bf16.mxu0 0
    %305 = vmatpush1.bf16.msra.mxu0 0
    %306 = vmatprep.mubr.bf16.mxu0 0
    %307 = vmatmul.mubr.bf16.gmra.mrb[0].mxu0 %v269
    %v308 = vpop.f32.mrb[0].mxu0
    %v309 = vadd.f32 %v240, %v308
    %v310 = vpop.f32.mrb[0].mxu0
    %v311 = vpop.f32.mrb[0].mxu0
    %v312 = vadd.f32 %v245, %v311
    %v313 = vpop.f32.mrb[0].mxu0
    %314 = vmatprep.mubr.bf16.mxu0 0
    %315 = vmatmul.mubr.bf16.gmra.mrb[0].mxu0 %v272
    %v316 = vpop.f32.mrb[0].mxu0
    %v317 = vadd.f32 %v250, %v316
    %v318 = vpop.f32.mrb[0].mxu0
    %v319 = vpop.f32.mrb[0].mxu0
    %v320 = vadd.f32 %v255, %v319
    %v321 = vpop.f32.mrb[0].mxu0
    %322 = vdwg.mxu0
    %v323 = vmax.f32 %v309, 0.0
    %v324 = vmax.f32 %v312, 0.0
    %v325 = vmax.f32 %v317, 0.0
    %v326 = vmax.f32 %v320, 0.0
    %v327 = vpack.c.bf16 %v324, %v323
    %v328 = vpack.c.bf16 %v326, %v325
    %v329 = vld [vmem:[%s3] sm:$0xf]
    %v330 = vld [vmem:[%s3 + $0x4] sm:$0xf]
    %332 = vset.pattern.permute.xlu0 0
    %333 = vperm.xlu0 %332, %v34
    %v334 = vpop.permute.xlu0 %333
    %337 = vset.pattern.permute.xlu0 0
    %338 = vperm.xlu0 %337, %v35
    %v339 = vpop.permute.xlu0 %338
    %v343 = vunpack.c.l.b16 %v329
    %v344 = vunpack.c.l.b16 %v330
    %v345 = vpack.c.b16 %v344, %v343
    %vm346 = vcmask 261120
    %v348 = vsel %vm346, %v345, 0
    %350 = vmatprep.subr.bf16.mxu0 0
    %351 = vmatpush1.bf16.msra.mxu0 %v327
    %352 = vmatprep.subr.bf16.mxu0 0
    %353 = vmatpush1.bf16.msra.mxu0 %v328
    %354 = vmatprep.subr.bf16.mxu0 0
    %355 = vmatpush1.bf16.msra.mxu0 0
    %356 = vmatprep.subr.bf16.mxu0 0
    %357 = vmatpush1.bf16.msra.mxu0 0
    %358 = vmatprep.subr.bf16.mxu0 0
    %359 = vmatpush1.bf16.msra.mxu0 0
    %360 = vmatprep.subr.bf16.mxu0 0
    %361 = vmatpush1.bf16.msra.mxu0 0
    %362 = vmatprep.subr.bf16.mxu0 0
    %363 = vmatpush1.bf16.msra.mxu0 0
    %364 = vmatprep.subr.bf16.mxu0 0
    %365 = vmatpush1.bf16.msra.mxu0 0
    %366 = vmatprep.subr.bf16.mxu0 0
    %367 = vmatpush1.bf16.msra.mxu0 0
    %368 = vmatprep.subr.bf16.mxu0 0
    %369 = vmatpush1.bf16.msra.mxu0 0
    %370 = vmatprep.subr.bf16.mxu0 0
    %371 = vmatpush1.bf16.msra.mxu0 0
    %372 = vmatprep.subr.bf16.mxu0 0
    %373 = vmatpush1.bf16.msra.mxu0 0
    %374 = vmatprep.subr.bf16.mxu0 0
    %375 = vmatpush1.bf16.msra.mxu0 0
    %376 = vmatprep.subr.bf16.mxu0 0
    %377 = vmatpush1.bf16.msra.mxu0 0
    %378 = vmatprep.subr.bf16.mxu0 0
    %379 = vmatpush1.bf16.msra.mxu0 0
    %380 = vmatprep.subr.bf16.mxu0 0
    %381 = vmatpush1.bf16.msra.mxu0 0
    %382 = vmatprep.mubr.bf16.mxu0 0
    %383 = vmatmul.mubr.bf16.gmra.mrb[0].mxu0 %v348
    %v384 = vpop.f32.mrb[0].mxu0
    %v385 = vadd.f32 %v334, %v384
    %v386 = vpop.f32.mrb[0].mxu0
    %v387 = vpop.f32.mrb[0].mxu0
    %v388 = vadd.f32 %v339, %v387
    %v389 = vpop.f32.mrb[0].mxu0
    %390 = vdwg.mxu0
    %v391 = vmax.f32 %v385, 0.0
    %v392 = vmax.f32 %v388, 0.0
    %394 = vset.pattern.permute.xlu0 0
    %395 = vperm.xlu0 %394, %v36
    %v396 = vpop.permute.xlu0 %395
    %399 = vset.pattern.permute.xlu0 0
    %400 = vperm.xlu0 %399, %v37
    %v401 = vpop.permute.xlu0 %400
    %v403 = vmul.f32 %v391, %v396
    %v404 = vmul.f32 %v392, %v401
    %v405 = vsel %vm88, %v403, 0.0
    %v406 = vsel %vm88, %v404, 0.0
    %v407 = vadd.f32 %v405, %v406
    %v408 = vrot.slane %v407, 4
    %v409 = vadd.f32 %v407, %v408
    %v410 = vrot.slane %v409, 2
    %v411 = vadd.f32 %v409, %v410
    %v412 = vrot.slane %v411, 1
    %v413 = vadd.f32 %v411, %v412
    %415 = vset.pattern.permute.xlu0 0
    %416 = vperm.xlu0 %415, %v38
    %v417 = vpop.permute.xlu0 %416
    %v419 = vadd.f32 %v413, %v417
    %vm420 = vcmask 57344
    %421 = vst.msk [vmem:[#allocation2] sm:$0x1] %vm420, %v419
    // Predicated region
    $region22: #{tpu_custom_call.1} parent=1 // pred_check
      _
    $region23: #{tpu_custom_call.1} parent=1 // pred_check_branch
      %423 = sbr.rel (0) target = $region25
    $region24: #{tpu_custom_call.1} parent=1 // pred_region
      %s425 = ssub.s32 16, 16
      %426 = vsyncadd [#allocation3], %s425
      %s428 = sshll.u32 [#allocation2], 4
      %s429 = int_to_ptr.vmem [resolvable:$true] %s428
      %431 = dma.vmem_to_hbm [thread:$0]  %s429, 16, %s5, [#allocation3]
    $region25: #{tpu_custom_call.1} parent=1 // pred_fallthru
      _
    // Predicated region
    $region26: #{tpu_custom_call.1} parent=1 // pred_check
      _
    $region27: #{tpu_custom_call.1} parent=1 // pred_check_branch
      %433 = sbr.rel (0) target = $region29
    $region28: #{tpu_custom_call.1} parent=1 // pred_region
      %434 = dma.done [#allocation3], 16
    $region29: #{tpu_custom_call.1} parent=1 // pred_fallthru
      _
    %435 = vsyncpa [#allocation3], 1

</llo_original>
